<compile_context>
chip_gen: v7x
topology: tpu7x:2x2x1
jax: 0.10.0
libtpu: 0.0.40
codegen_flags: <defaults>
</compile_context>

<pallas_src>
import jax
import jax.numpy as jnp
from jax import lax
from jax.experimental import pallas as pl
from jax.experimental.pallas import tpu as pltpu


def _metaphor_kernel(x_ref, w_ref, b_ref, o_ref):
    # x_ref: (TILE_M, K)      activation tile (native dtype)
    # w_ref: (C_pad, K)       fcl weight, native torch (out, in) layout, padded rows = 0
    # b_ref: (C_pad, 1)       f32 bias, padded entries = -1e30 (exclude fake classes)
    # o_ref: (C_pad, TILE_M)  transposed log-softmax tile (lane-dense rows)
    x = x_ref[...]
    w = w_ref[...]
    # (C_pad, K) · (TILE_M, K)ᵀ -> (C_pad, TILE_M).  Both operands contract their last
    # dim (flash-attention q·kᵀ pattern): the weight is the natural MXU LHS, and the
    # transposed output orientation makes every output row a long, unmasked,
    # lane-dense store (no 128-lane padding of the tiny class dim).
    logits = lax.dot_general(
        x=None or w, y=None or x,  # keep positional clarity below
        dimension_numbers=(((1,), (1,)), ((), ())),
        preferred_element_type=jnp.float32,
    ) if False else lax.dot_general(
        w, x,
        dimension_numbers=(((1,), (1,)), ((), ())),
        preferred_element_type=jnp.float32,
    )
    logits = logits + b_ref[...]

    # Numerically-stable log_softmax along the class axis (axis 0; only C_pad = 8
    # sublanes, so the cross-sublane reduction is trivial XLU work).  Padded classes
    # sit at ~-1e30 -> exp underflows to exactly 0 and they drop out of the normalizer.
    m = jnp.max(logits, axis=0, keepdims=True)
    z = logits - m
    lse = jnp.log(jnp.sum(jnp.exp(z), axis=0, keepdims=True))
    o_ref[...] = (z - lse).astype(o_ref.dtype)


def metaphor_forward(output, weight, bias, *, tile_m=None):
    """output: (B, S, 2H); weight: (C, 2H) torch layout; bias: (C,). Returns (B, S, C)."""
    B, S, K = output.shape
    C = weight.shape[0]
    M = B * S

    SUBLANE, LANE = 8, 128
    C_pad = max(SUBLANE, pl.cdiv(C, SUBLANE) * SUBLANE)

    x2d = output.reshape(M, K)                         # free reshape, no HBM copy
    in_bytes = output.dtype.itemsize
    out_bytes = in_bytes                               # output keeps the input dtype

    # Generation-aware VMEM budget: v7x has 64 MiB physical VMEM vs 128 MiB on v5e/v6e.
    try:
        vmem_cap = int(pltpu.get_tpu_info().vmem_capacity_bytes)
    except Exception:
        vmem_cap = 64 * 1024 * 1024
    vmem_budget = min(int(vmem_cap * 0.6), 100 * 1024 * 1024)

    if tile_m is None:
        # Double-buffered x tile + double-buffered output tile per row must fit budget.
        per_row = 2 * (K * in_bytes + C_pad * out_bytes)
        tile_m = max(LANE, min(4096, (vmem_budget // max(per_row, 1)) // LANE * LANE))

    if M <= tile_m:
        TILE_M = M                                     # single block; dims == full dims
    else:
        TILE_M = max(LANE, (tile_m // LANE) * LANE)    # 128-aligned lane-dense out tiles
    grid = (pl.cdiv(M, TILE_M),)                       # ragged last block masked by Pallas

    # Pad the class dim only to the 8-sublane granule: zero weight rows + very-negative
    # bias exclude the padded classes from the softmax normalizer.  (-1e30 is fine for
    # f32/bf16 outputs; it would overflow for float16 outputs, but those rows are
    # sliced off below anyway.)  Weight is cast to the activation dtype so the MXU
    # operand dtypes are pinned.
    w_pad = jnp.zeros((C_pad, K), output.dtype).at[:C, :].set(weight.astype(output.dtype))
    b_pad = jnp.full((C_pad, 1), -1e30, jnp.float32).at[:C, 0].set(
        bias.astype(jnp.float32))

    # Only CORE_PARALLEL actually splits a grid axis across v7x's two TensorCores
    # ("parallel" vs "arbitrary" barely changes codegen); v5e/v6e have a single TC.
    try:
        kind = jax.devices()[0].device_kind.lower()
    except Exception:
        kind = ""
    if "7" in kind and grid[0] >= 2:
        semantics = (pltpu.CORE_PARALLEL,)
    else:
        semantics = (pltpu.PARALLEL,)

    cost = pl.CostEstimate(
        flops=2 * M * K * C_pad,
        transcendentals=M * (C_pad + 1),               # exp per class + log per row
        bytes_accessed=(M * K * in_bytes               # activations
                        + C_pad * K * in_bytes         # resident weight
                        + C_pad * 4                    # bias
                        + C_pad * M * out_bytes),      # packed transposed output
    )

    outT = pl.pallas_call(
        _metaphor_kernel,
        out_shape=jax.ShapeDtypeStruct((C_pad, M), output.dtype),
        grid_spec=pl.GridSpec(
            grid=grid,
            in_specs=[
                pl.BlockSpec((TILE_M, K), lambda i: (i, 0)),   # activation tile
                pl.BlockSpec((C_pad, K), lambda i: (0, 0)),    # resident weight
                pl.BlockSpec((C_pad, 1), lambda i: (0, 0)),    # resident bias
            ],
            out_specs=pl.BlockSpec((C_pad, TILE_M), lambda i: (0, i)),
        ),
        compiler_params=pltpu.CompilerParams(
            dimension_semantics=semantics,
            vmem_limit_bytes=vmem_budget,
        ),
        cost_estimate=cost,
    )(x2d, w_pad, b_pad)

    # Drop padded classes and restore (B, S, C); transposing the tiny (C, M) result
    # outside the kernel is far cheaper than lane-padding the kernel's HBM output.
    return outT[:C, :].T.reshape(B, S, C)


if __name__ == "__main__":
    # Small shapes consistent with the module: hidden_dim=16 -> in_features=32
    B, S, H, C = 2, 8, 16, 4
    key = jax.random.PRNGKey(0)
    k_x, k_w, k_b = jax.random.split(key, 3)

    x = jax.random.normal(k_x, (B, S, 2 * H), dtype=jnp.float32)
    # torch-like uniform(-1/sqrt(in), 1/sqrt(in)) init
    bound = 1.0 / jnp.sqrt(2.0 * H)
    weight = jax.random.uniform(k_w, (C, 2 * H), minval=-bound, maxval=bound,
                                dtype=jnp.float32)
    bias = jax.random.uniform(k_b, (C,), minval=-bound, maxval=bound,
                              dtype=jnp.float32)

    out = metaphor_forward(x, weight, bias)
    jax.block_until_ready(out)

    # sanity check against pure-JAX reference
    ref = jax.nn.log_softmax(x @ weight.T + bias, axis=-1)
    assert out.shape == (B, S, C), f"bad shape {out.shape}"
    assert jnp.allclose(out, ref, atol=1e-5), "mismatch vs reference"

    print("KERNEL_OK")
</pallas_src>

<mosaic_0001>
module attributes {stable_mosaic.version = 11 : i64} {
  func.func @_metaphor_kernel(%arg0: i32, %arg1: memref<16x32xf32, #tpu.memory_space<vmem>>, %arg2: memref<8x32xf32, #tpu.memory_space<vmem>>, %arg3: memref<8x1xf32, #tpu.memory_space<vmem>>, %arg4: memref<8x16xf32, #tpu.memory_space<vmem>>) attributes {dimension_semantics = [#tpu.dimension_semantics<parallel>], iteration_bounds = array<i64: 1>, scalar_prefetch = 0 : i64, scratch_operands = 0 : i64, tpu.core_type = #tpu.core_type<tc>, window_params = [{transform_indices = @transform_0, window_bounds = array<i64: 16, 32>}, {pipeline_mode = #tpu.pipeline_mode<synchronous>, transform_indices = @transform_1, window_bounds = array<i64: 8, 32>}, {pipeline_mode = #tpu.pipeline_mode<synchronous>, transform_indices = @transform_2, window_bounds = array<i64: 8, 1>}, {transform_indices = @transform_3, window_bounds = array<i64: 8, 16>}]} {
    %c0 = arith.constant 0 : index
    %c0_0 = arith.constant 0 : index
    %0 = vector.load %arg1[%c0, %c0_0] : memref<16x32xf32, #tpu.memory_space<vmem>>, vector<16x32xf32>
    %c0_1 = arith.constant 0 : index
    %c0_2 = arith.constant 0 : index
    %1 = vector.load %arg2[%c0_1, %c0_2] : memref<8x32xf32, #tpu.memory_space<vmem>>, vector<8x32xf32>
    %cst = arith.constant dense<0.000000e+00> : vector<8x16xf32>
    %2 = tpu.matmul %1, %0, %cst {dimension_numbers = #tpu.dot_dimension_numbers<[1], [1], [0], [0], [0, 0, 1, 0], [], []>} : vector<8x32xf32>, vector<16x32xf32>, vector<8x16xf32> -> vector<8x16xf32>
    %c0_3 = arith.constant 0 : index
    %c0_4 = arith.constant 0 : index
    %3 = vector.load %arg3[%c0_3, %c0_4] : memref<8x1xf32, #tpu.memory_space<vmem>>, vector<8x1xf32>
    %4 = vector.broadcast %3 : vector<8x1xf32> to vector<8x16xf32>
    %5 = arith.addf %2, %4 : vector<8x16xf32>
    %cst_5 = arith.constant dense<0xFF800000> : vector<16xf32>
    %6 = vector.multi_reduction <maximumf>, %5, %cst_5 [0] : vector<8x16xf32> to vector<16xf32>
    %7 = vector.shape_cast %6 : vector<16xf32> to vector<1x16xf32>
    %8 = vector.broadcast %7 : vector<1x16xf32> to vector<8x16xf32>
    %9 = arith.subf %5, %8 : vector<8x16xf32>
    %10 = math.exp %9 : vector<8x16xf32>
    %cst_6 = arith.constant dense<0.000000e+00> : vector<16xf32>
    %11 = vector.multi_reduction <add>, %10, %cst_6 [0] : vector<8x16xf32> to vector<16xf32>
    %12 = vector.shape_cast %11 : vector<16xf32> to vector<1x16xf32>
    %13 = math.log %12 : vector<1x16xf32>
    %14 = vector.broadcast %13 : vector<1x16xf32> to vector<8x16xf32>
    %15 = arith.subf %9, %14 : vector<8x16xf32>
    %c0_7 = arith.constant 0 : index
    %c0_8 = arith.constant 0 : index
    %16 = vector.load %arg4[%c0_7, %c0_8] : memref<8x16xf32, #tpu.memory_space<vmem>>, vector<8x16xf32>
    tpu.vector_store %arg4[%c0_7, %c0_8], %15 {strides = array<i32>} : memref<8x16xf32, #tpu.memory_space<vmem>>, vector<8x16xf32>,
    return
  }
  func.func @transform_0(%arg0: i32) -> (i32, i32) {
    %c0_i32 = arith.constant 0 : i32
    %c0_i32_0 = arith.constant 0 : i32
    return %arg0, %c0_i32 : i32, i32
  }
  func.func @transform_1(%arg0: i32) -> (i32, i32) {
    %c0_i32 = arith.constant 0 : i32
    %c0_i32_0 = arith.constant 0 : i32
    %c0_i32_1 = arith.constant 0 : i32
    return %c0_i32, %c0_i32_0 : i32, i32
  }
  func.func @transform_2(%arg0: i32) -> (i32, i32) {
    %c0_i32 = arith.constant 0 : i32
    %c0_i32_0 = arith.constant 0 : i32
    %c0_i32_1 = arith.constant 0 : i32
    return %c0_i32, %c0_i32_0 : i32, i32
  }
  func.func @transform_3(%arg0: i32) -> (i32, i32) {
    %c0_i32 = arith.constant 0 : i32
    %c0_i32_0 = arith.constant 0 : i32
    return %c0_i32, %arg0 : i32, i32
  }
}

</mosaic_0001>

<llo_original>
// kernel: tpu_custom_call.1
$region0: #{tpu_custom_call.1}
  #allocation0 [shape = 'u32[]', space=smem, size = 0x4, offset = 0x4, fixed_abs, tag = 'smem constant byte address 0x4 - core index']
  #allocation1 [shape = 'u32[144,128]{1,0:T(1,128)}', space=vmem, size = 0x12000, scoped, tag = 'internal scratch']
  %s0 = inlined_call_operand.hbm [shape: f32[16,32], index: 0, kind: input, shape index: {}]
  %s1 = inlined_call_operand.vmem [shape: f32[8,32], index: 1, kind: input, shape index: {}]
  %s2 = inlined_call_operand.vmem [shape: f32[8,1], index: 2, kind: input, shape index: {}]
  %s3 = inlined_call_operand.hbm [shape: f32[8,16], index: 3, kind: output, shape index: {}]
  %s4 = sld [smem:[#allocation0]]
  $region26: #{tpu_custom_call.1} parent=0
    _
  %s6 = ssub.s32 1, %s4
  %s7 = scalar_select 0, %s6, %s4
  $region1: #{tpu_custom_call.1} parent=0
    #allocation2 [shape = 'u8[8192]{0}', space=vmem, size = 0x2000, scoped, tag = 'input window, operand 0, single buffered']
    #allocation3 [shape = 's32[1]{0}', space=sflag, size = 0x4, scoped, tag = 'scoped memory for tpu_custom_call.1']
    #allocation4 [shape = 's32[1]{0}', space=sflag, size = 0x4, scoped, tag = 'scoped memory for tpu_custom_call.1']
    #allocation5 [shape = 'u8[4096]{0}', space=vmem, size = 0x1000, scoped, tag = 'output window, operand 0, single buffered']
    %8 = vsyncpa [#allocation3], 0
    %9 = vsyncpa [#allocation4], 0
    // Predicated region
    $region2: #{tpu_custom_call.1} parent=1 // pred_check
      _
    $region3: #{tpu_custom_call.1} parent=1 // pred_check_branch
      %11 = sbr.rel (0) target = $region5
    $region4: #{tpu_custom_call.1} parent=1 // pred_region
      %s13 = ssub.s32 256, 256
      %14 = vsyncadd [#allocation3], %s13
      %s15 = sshll.u32 [#allocation2], 4
      %s16 = int_to_ptr.vmem [resolvable:$true] %s15
      %21 = dma.hbm_to_vmem [thread:$0]  %s0, 256, %s16, [#allocation3], 128, 128, 8
    $region5: #{tpu_custom_call.1} parent=1 // pred_fallthru
      _
    // Predicated region
    $region6: #{tpu_custom_call.1} parent=1 // pred_check
      _
    $region7: #{tpu_custom_call.1} parent=1 // pred_check_branch
      %23 = sbr.rel (0) target = $region9
    $region8: #{tpu_custom_call.1} parent=1 // pred_region
      _
    $region9: #{tpu_custom_call.1} parent=1 // pred_fallthru
      _
    // Predicated region
    $region10: #{tpu_custom_call.1} parent=1 // pred_check
      _
    $region11: #{tpu_custom_call.1} parent=1 // pred_check_branch
      %25 = sbr.rel (0) target = $region13
    $region12: #{tpu_custom_call.1} parent=1 // pred_region
      _
    $region13: #{tpu_custom_call.1} parent=1 // pred_fallthru
      _
    // Predicated region
    $region14: #{tpu_custom_call.1} parent=1 // pred_check
      _
    $region15: #{tpu_custom_call.1} parent=1 // pred_check_branch
      %27 = sbr.rel (0) target = $region17
    $region16: #{tpu_custom_call.1} parent=1 // pred_region
      %28 = dma.done [#allocation3], 256
    $region17: #{tpu_custom_call.1} parent=1 // pred_fallthru
      _
    %v29 = vld [vmem:[#allocation2] sm:$0xff]
    %v30 = vld [vmem:[#allocation2 + $0x8] sm:$0xff]
    %v31 = vld [vmem:[%s1] sm:$0xff]
    %v32 = vld [vmem:[%s2] sm:$0xff]
    %34 = vset.pattern.permute.xlu0 0
    %35 = vperm.xlu0 %34, %v32
    %v36 = vpop.permute.xlu0 %35
    %vm38 = vcmask 261120
    %v40 = vsel %vm38, %v31, 0
    %v43 = vsel %vm38, %v29, 0
    %v46 = vsel %vm38, %v30, 0
    %48 = vmatprep.subr.mxu0 0.0
    %49 = vmatpush1.xpose.msra.mxu0 %v43
    %50 = vmatprep.subr.mxu0 0.0
    %51 = vmatpush1.xpose.msra.mxu0 %v46
    %52 = vmatprep.subr.mxu0 0.0
    %53 = vmatpush1.xpose.msra.mxu0 0.0
    %54 = vmatprep.subr.mxu0 0.0
    %55 = vmatpush1.xpose.msra.mxu0 0.0
    %56 = vmatprep.subr.mxu0 0.0
    %57 = vmatpush1.xpose.msra.mxu0 0.0
    %58 = vmatprep.subr.mxu0 0.0
    %59 = vmatpush1.xpose.msra.mxu0 0.0
    %60 = vmatprep.subr.mxu0 0.0
    %61 = vmatpush1.xpose.msra.mxu0 0.0
    %62 = vmatprep.subr.mxu0 0.0
    %63 = vmatpush1.xpose.msra.mxu0 0.0
    %64 = vmatprep.subr.mxu0 0.0
    %65 = vmatpush1.xpose.msra.mxu0 0.0
    %66 = vmatprep.subr.mxu0 0.0
    %67 = vmatpush1.xpose.msra.mxu0 0.0
    %68 = vmatprep.subr.mxu0 0.0
    %69 = vmatpush1.xpose.msra.mxu0 0.0
    %70 = vmatprep.subr.mxu0 0.0
    %71 = vmatpush1.xpose.msra.mxu0 0.0
    %72 = vmatprep.subr.mxu0 0.0
    %73 = vmatpush1.xpose.msra.mxu0 0.0
    %74 = vmatprep.subr.mxu0 0.0
    %75 = vmatpush1.xpose.msra.mxu0 0.0
    %76 = vmatprep.subr.mxu0 0.0
    %77 = vmatpush1.xpose.msra.mxu0 0.0
    %78 = vmatprep.subr.mxu0 0.0
    %79 = vmatpush1.xpose.msra.mxu0 0.0
    %80 = vmatprep.subr.mxu0 0.0
    %81 = vmatpush1.xpose.msra.mxu0 0.0
    %82 = vmatprep.subr.mxu0 0.0
    %83 = vmatpush1.xpose.msra.mxu0 0.0
    %84 = vmatprep.subr.mxu0 0.0
    %85 = vmatpush1.xpose.msra.mxu0 0.0
    %86 = vmatprep.subr.mxu0 0.0
    %87 = vmatpush1.xpose.msra.mxu0 0.0
    %88 = vmatprep.subr.mxu0 0.0
    %89 = vmatpush1.xpose.msra.mxu0 0.0
    %90 = vmatprep.subr.mxu0 0.0
    %91 = vmatpush1.xpose.msra.mxu0 0.0
    %92 = vmatprep.subr.mxu0 0.0
    %93 = vmatpush1.xpose.msra.mxu0 0.0
    %94 = vmatprep.subr.mxu0 0.0
    %95 = vmatpush1.xpose.msra.mxu0 0.0
    %96 = vmatprep.subr.mxu0 0.0
    %97 = vmatpush1.xpose.msra.mxu0 0.0
    %98 = vmatprep.subr.mxu0 0.0
    %99 = vmatpush1.xpose.msra.mxu0 0.0
    %100 = vmatprep.subr.mxu0 0.0
    %101 = vmatpush1.xpose.msra.mxu0 0.0
    %102 = vmatprep.subr.mxu0 0.0
    %103 = vmatpush1.xpose.msra.mxu0 0.0
    %104 = vmatprep.subr.mxu0 0.0
    %105 = vmatpush1.xpose.msra.mxu0 0.0
    %106 = vmatprep.subr.mxu0 0.0
    %107 = vmatpush1.xpose.msra.mxu0 0.0
    %108 = vmatprep.subr.mxu0 0.0
    %109 = vmatpush1.xpose.msra.mxu0 0.0
    %110 = vmatprep.subr.mxu0 0.0
    %111 = vmatpush1.xpose.msra.mxu0 0.0
    %112 = vmatprep.mubr.f32.mxu0 0.0
    %113 = vmatmul.mubr.f32.gmra.mrb[0].mxu0 %v40
    %v114 = vpop.f32.mrb[0].mxu0
    %v115 = vadd.f32 %v36, %v114
    %v116 = vpop.f32.mrb[0].mxu0
    %117 = vdwg.mxu0
    %vm118 = vcmask 130048
    %v119 = vsel %vm118, %v115, -inf
    %v120 = vrot.slane %v119, 4
    %v121 = vmax.f32 %v119, %v120
    %v122 = vrot.slane %v121, 2
    %v123 = vmax.f32 %v121, %v122
    %v124 = vrot.slane %v123, 1
    %v125 = vmax.f32 %v123, %v124
    %v126 = vsub.f32 %v115, %v125
    %v127 = vmul.f32 %v126, 1.442695
    %v128 = vpow.pop %v127
    %v129 = vsel %vm118, %v128, 0.0
    %v130 = vrot.slane %v129, 4
    %v131 = vadd.f32 %v129, %v130
    %v132 = vrot.slane %v131, 2
    %v133 = vadd.f32 %v131, %v132
    %v134 = vrot.slane %v133, 1
    %v135 = vadd.f32 %v133, %v134
    %v136 = vlog2.pop %v135
    %v137 = vmul.f32 %v136, 0.6931472
    %v138 = vsub.f32 %v126, %v137
    %139 = vst.msk [vmem:[#allocation5] sm:$0xff] %vm118, %v138
    // Predicated region
    $region18: #{tpu_custom_call.1} parent=1 // pred_check
      _
    $region19: #{tpu_custom_call.1} parent=1 // pred_check_branch
      %141 = sbr.rel (0) target = $region21
    $region20: #{tpu_custom_call.1} parent=1 // pred_region
      %s143 = ssub.s32 128, 128
      %144 = vsyncadd [#allocation4], %s143
      %s146 = sshll.u32 [#allocation5], 4
      %s147 = int_to_ptr.vmem [resolvable:$true] %s146
      %149 = dma.vmem_to_hbm [thread:$0]  %s147, 128, %s3, [#allocation4]
    $region21: #{tpu_custom_call.1} parent=1 // pred_fallthru
      _
    // Predicated region
    $region22: #{tpu_custom_call.1} parent=1 // pred_check
      _
    $region23: #{tpu_custom_call.1} parent=1 // pred_check_branch
      %151 = sbr.rel (0) target = $region25
    $region24: #{tpu_custom_call.1} parent=1 // pred_region
      %152 = dma.done [#allocation4], 128
    $region25: #{tpu_custom_call.1} parent=1 // pred_fallthru
      _
    %153 = vsyncpa [#allocation3], 1
    %154 = vsyncpa [#allocation4], 1

</llo_original>
